<compile_context>
chip_gen: v7x
topology: tpu7x:2x2x1
jax: 0.10.0
libtpu: 0.0.40
codegen_flags: <defaults>
</compile_context>

<pallas_src>
import jax
import jax.numpy as jnp
from jax.experimental import pallas as pl
from jax.experimental.pallas import tpu as pltpu


# ---------------------------------------------------------------------------
# Fast path: identity is identity. No kernel, no copy, no allocation.
# ---------------------------------------------------------------------------
def identity_encoder_forward(obs, detach=False):
    """Pallas/JAX equivalent of IdentityEncoder.forward(obs).

    `detach` is a no-op here: JAX forward functions carry no autograd graph
    to detach (gradient stopping would be `lax.stop_gradient` at the caller).
    """
    del detach
    return obs


# ---------------------------------------------------------------------------
# Optional path: materialize a fresh output buffer with a single HBM->HBM DMA.
# Only use this if a distinct buffer is required for API reasons.
# ---------------------------------------------------------------------------
def _hbm_identity_copy_kernel(obs_hbm, out_hbm, sem):
    # One DMA, input HBM -> output HBM. No VMEM staging, no vreg traffic.
    cp = pltpu.make_async_copy(obs_hbm, out_hbm, sem)
    cp.start()
    cp.wait()


def identity_copy(obs):
    """Materialize a fresh copy of `obs` via a single HBM->HBM DMA."""
    return pl.pallas_call(
        _hbm_identity_copy_kernel,
        out_shape=jax.ShapeDtypeStruct(obs.shape, obs.dtype),
        in_specs=[pl.BlockSpec(memory_space=pl.ANY)],
        out_specs=pl.BlockSpec(memory_space=pl.ANY),
        scratch_shapes=[pltpu.SemaphoreType.DMA],
    )(obs)


# ---------------------------------------------------------------------------
# Module mirror
# ---------------------------------------------------------------------------
class IdentityEncoderPallas:
    """Mirror of the PyTorch IdentityEncoder. No parameters."""

    def __init__(self, obs_shape, feature_dim, num_layers, num_filters):
        assert len(obs_shape) == 1
        # Matches the PyTorch reference: feature_dim comes from obs_shape,
        # the feature_dim/num_layers/num_filters args are intentionally unused.
        self.feature_dim = obs_shape[0]

    def __call__(self, obs, detach=False):
        return identity_encoder_forward(obs, detach=detach)

    def copy_conv_weights_from(self, source):
        pass  # no conv weights — matches reference

    def log(self, L, step, log_freq):
        pass  # logging is a no-op — matches reference


if __name__ == "__main__":
    key = jax.random.PRNGKey(0)
    batch, feat = 8, 32  # small shapes: obs_shape = (32,)
    obs = jax.random.normal(key, (batch, feat), dtype=jnp.float32)

    enc = IdentityEncoderPallas(obs_shape=(feat,), feature_dim=feat,
                                num_layers=2, num_filters=32)

    # 1) Forward path: true no-op identity (what the module actually does).
    out = enc(obs)
    out = jax.block_until_ready(out)
    assert out.shape == obs.shape and out.dtype == obs.dtype
    assert bool(jnp.all(out == obs))

    # 2) Optional materializing copy: single HBM->HBM DMA Pallas kernel.
    out_copy = identity_copy(obs)
    out_copy = jax.block_until_ready(out_copy)
    assert out_copy.shape == obs.shape and out_copy.dtype == obs.dtype
    assert bool(jnp.all(out_copy == obs))

    print("KERNEL_OK")
</pallas_src>

<mosaic_0001>
module attributes {stable_mosaic.version = 11 : i64} {
  func.func @_hbm_identity_copy_kernel(%arg0: memref<8x32xf32, #tpu.memory_space<any>>, %arg1: memref<8x32xf32, #tpu.memory_space<any>>, %arg2: memref<!tpu.dma_semaphore, #tpu.memory_space<semaphore_mem>>) attributes {dimension_semantics = [], scalar_prefetch = 0 : i64, scratch_operands = 1 : i64, tpu.core_type = #tpu.core_type<tc>} {
    tpu.enqueue_dma source(%arg0 : memref<8x32xf32, #tpu.memory_space<any>>) target(%arg1 : memref<8x32xf32, #tpu.memory_space<any>>) target_semaphore(%arg2 : memref<!tpu.dma_semaphore, #tpu.memory_space<semaphore_mem>>)
    tpu.wait_dma2 semaphore(%arg2 : memref<!tpu.dma_semaphore, #tpu.memory_space<semaphore_mem>>) src(%arg0 : memref<8x32xf32, #tpu.memory_space<any>>) dst(%arg1 : memref<8x32xf32, #tpu.memory_space<any>>)
    return
  }
}

</mosaic_0001>

<llo_original>
// kernel: tpu_custom_call.1
$region0: #{tpu_custom_call.1}
  #allocation0 [shape = 'u32[]', space=smem, size = 0x4, offset = 0x4, fixed_abs, tag = 'smem constant byte address 0x4 - core index']
  #allocation1 [shape = 'u32[144,128]{1,0:T(1,128)}', space=vmem, size = 0x12000, scoped, tag = 'internal scratch']
  #allocation2 [shape = 's32[1]{0}', space=sflag, size = 0x4, scoped, tag = 'scratch operand']
  #allocation3 [shape = 's32[]', space=sflag, size = 0x4, offset = 0, fixed_abs, tag = 'sflag constant byte address 0x0 - dummy sync flag']
  #allocation4 [shape = 'u32[0]{0}', space=smem, size = 0, offset = 0, fixed_abs, tag = 'smem constant byte address 0x0 - null']
  %s0 = inlined_call_operand.hbm [shape: f32[8,32], index: 0, kind: input, shape index: {}]
  %s1 = inlined_call_operand.hbm [shape: f32[8,32], index: 1, kind: output, shape index: {}]
  %s2 = sld [smem:[#allocation0]]
  $region2: #{tpu_custom_call.1} parent=0
    _
  %s4 = ssub.s32 1, %s2
  %s5 = scalar_select 0, %s4, %s2
  %s7 = sshll.u32 1, 14
  %s8 = sxor.u32 4294967295, %s7
  %s11 = sshll.u32 3, 24
  %s12 = sxor.u32 4294967295, %s11
  %s13 = sand.u32 0, %s12
  %s15 = sor.u32 %s13, 0
  %18 = dma.general %s0, 128, %s1, [#allocation2], [#allocation3], [#allocation4], %s15, 0
  %s19 = smul.u32 8, 1
  %s20 = sshll.u32 %s19, 4
  %21 = dma.done [#allocation2], %s20
  %22 = vsyncmov [#allocation2]
  %s23 = vpop.sfrf %22
  %p24 = scmp.eq.s32.totalorder %s23, 0
  %p25 = pneg %p24
  %27 = shalt.err (%p25)

</llo_original>
